<compile_context>
chip_gen: v7x
topology: tpu7x:2x2x1
jax: 0.10.0
libtpu: 0.0.40
codegen_flags: <defaults>
</compile_context>

<pallas_src>
import math

import jax
import jax.numpy as jnp
from jax.experimental import pallas as pl
from jax.experimental.pallas import tpu as pltpu


# ~4 MiB per DMA chunk, at most 8 chunks in flight.  Small tensors collapse
# to a single whole-array DMA.
_TARGET_CHUNK_BYTES = 4 * 1024 * 1024
_MAX_CHUNKS = 8


def _make_dma_copy_kernel(chunks):
    """Kernel issuing one HBM->HBM DMA per (start, size) chunk along axis 0."""

    def kernel(x_ref, o_ref, sem):
        # Issue every chunk first so all DMAs are in flight concurrently...
        for i, (start, size) in enumerate(chunks):
            pltpu.make_async_copy(
                x_ref.at[pl.ds(start, size)],
                o_ref.at[pl.ds(start, size)],
                sem.at[i],
            ).start()
        # ...then wait for them all to land.
        for i, (start, size) in enumerate(chunks):
            pltpu.make_async_copy(
                x_ref.at[pl.ds(start, size)],
                o_ref.at[pl.ds(start, size)],
                sem.at[i],
            ).wait()

    return kernel


def _pallas_copy_flat(flat):
    """Identity copy of the flat stream via chunked HBM->HBM DMA."""
    total = flat.size
    if total == 0:
        return flat

    dtype = flat.dtype
    itemsize = jnp.dtype(dtype).itemsize
    total_bytes = total * itemsize

    if total % 128 == 0:
        # Lane-width view so chunk boundaries stay (8,128)-tile aligned.
        width = 128
        rows = total // width
        arr = flat.reshape(rows, width)  # metadata-only under jit
        num_chunks = int(
            max(1, min(_MAX_CHUNKS, rows, total_bytes // _TARGET_CHUNK_BYTES)))
        rows_per_chunk = -(-rows // num_chunks)           # ceil division
        rows_per_chunk = ((rows_per_chunk + 7) // 8) * 8  # align to 8 sublanes
        chunks = []
        start = 0
        while start < rows:
            size = min(rows_per_chunk, rows - start)
            chunks.append((start, size))
            start += size
    else:
        # Unaligned totals: one whole-array DMA.  No VMEM block is involved,
        # so there is no sublane-padding blow-up for odd sizes.
        arr = flat
        chunks = [(0, total)]

    out = pl.pallas_call(
        _make_dma_copy_kernel(tuple(chunks)),
        out_shape=jax.ShapeDtypeStruct(arr.shape, dtype),
        in_specs=[pl.BlockSpec(memory_space=pl.ANY)],
        out_specs=pl.BlockSpec(memory_space=pl.ANY),
        scratch_shapes=[pltpu.SemaphoreType.DMA((len(chunks),))],
        cost_estimate=pl.CostEstimate(
            flops=0, transcendentals=0, bytes_accessed=2 * total_bytes),
    )(arr)
    return out.reshape(-1)


class Reshape:
    """JAX/Pallas equivalent of the PyTorch Reshape module."""

    def __init__(self, *shape):
        self.shape = tuple(shape)
        # jit the whole forward so the pre/post reshapes around the Pallas copy
        # are metadata-only (no extra HBM passes from eager-mode reshapes).
        self._forward = jax.jit(self._forward_impl)

    def _resolve_shape(self, total):
        shape = list(self.shape)
        if -1 in shape:
            assert shape.count(-1) == 1, "at most one -1 allowed in shape"
            known = math.prod(s for s in shape if s != -1)
            assert known > 0 and total % known == 0, (
                f"cannot reshape {total} elements into {self.shape}")
            shape[shape.index(-1)] = total // known
        assert math.prod(shape) == total, (
            f"cannot reshape {total} elements into {self.shape}")
        return tuple(shape)

    def _forward_impl(self, x):
        out_shape = self._resolve_shape(x.size)
        flat = _pallas_copy_flat(x.reshape(-1))   # reshape is metadata under jit
        return flat.reshape(out_shape)            # metadata-only under jit

    def __call__(self, x):
        return self._forward(x)


if __name__ == "__main__":
    key = jax.random.PRNGKey(0)
    # NCHW-style input: (batch=2, C=4, H=16, W=16).
    x = jax.random.normal(key, (2, 4, 16, 16), dtype=jnp.float32)

    # Reshape(2, -1, 16): (2, 4, 16, 16) -> (2, 64, 16)
    module = Reshape(2, -1, 16)
    y = module(x)
    y = jax.block_until_ready(y)

    ref = x.reshape(2, -1, 16)
    assert y.shape == (2, 64, 16), y.shape
    assert y.dtype == x.dtype
    assert bool(jnp.array_equal(y, ref))

    print("KERNEL_OK")
</pallas_src>

<mosaic_0001>
module attributes {stable_mosaic.version = 11 : i64} {
  func.func @kernel(%arg0: memref<16x128xf32, #tpu.memory_space<any>>, %arg1: memref<16x128xf32, #tpu.memory_space<any>>, %arg2: memref<1x!tpu.dma_semaphore, #tpu.memory_space<semaphore_mem>>) attributes {dimension_semantics = [], scalar_prefetch = 0 : i64, scratch_operands = 1 : i64, tpu.core_type = #tpu.core_type<tc>} {
    %c0_i32 = arith.constant 0 : i32
    %c0_i32_0 = arith.constant 0 : i32
    %c0_i32_1 = arith.constant 0 : i32
    %0 = tpu.memref_slice %arg0[%c0_i32_0, %c0_i32_1] : memref<16x128xf32, #tpu.memory_space<any>> -> memref<16x128xf32, #tpu.memory_space<any>>
    %c0_i32_2 = arith.constant 0 : i32
    %c0_i32_3 = arith.constant 0 : i32
    %1 = tpu.memref_slice %arg1[%c0_i32_2, %c0_i32_3] : memref<16x128xf32, #tpu.memory_space<any>> -> memref<16x128xf32, #tpu.memory_space<any>>
    %2 = tpu.memref_slice %arg2[%c0_i32] : memref<1x!tpu.dma_semaphore, #tpu.memory_space<semaphore_mem>> -> memref<1x!tpu.dma_semaphore, #tpu.memory_space<semaphore_mem>>
    %3 = tpu.memref_squeeze %2 : memref<1x!tpu.dma_semaphore, #tpu.memory_space<semaphore_mem>> -> memref<!tpu.dma_semaphore, #tpu.memory_space<semaphore_mem>>
    tpu.enqueue_dma source(%0 : memref<16x128xf32, #tpu.memory_space<any>>) target(%1 : memref<16x128xf32, #tpu.memory_space<any>>) target_semaphore(%3 : memref<!tpu.dma_semaphore, #tpu.memory_space<semaphore_mem>>)
    %c0_i32_4 = arith.constant 0 : i32
    %c0_i32_5 = arith.constant 0 : i32
    %c0_i32_6 = arith.constant 0 : i32
    %4 = tpu.memref_slice %arg0[%c0_i32_5, %c0_i32_6] : memref<16x128xf32, #tpu.memory_space<any>> -> memref<16x128xf32, #tpu.memory_space<any>>
    %c0_i32_7 = arith.constant 0 : i32
    %c0_i32_8 = arith.constant 0 : i32
    %5 = tpu.memref_slice %arg1[%c0_i32_7, %c0_i32_8] : memref<16x128xf32, #tpu.memory_space<any>> -> memref<16x128xf32, #tpu.memory_space<any>>
    %6 = tpu.memref_slice %arg2[%c0_i32_4] : memref<1x!tpu.dma_semaphore, #tpu.memory_space<semaphore_mem>> -> memref<1x!tpu.dma_semaphore, #tpu.memory_space<semaphore_mem>>
    %7 = tpu.memref_squeeze %6 : memref<1x!tpu.dma_semaphore, #tpu.memory_space<semaphore_mem>> -> memref<!tpu.dma_semaphore, #tpu.memory_space<semaphore_mem>>
    tpu.wait_dma2 semaphore(%7 : memref<!tpu.dma_semaphore, #tpu.memory_space<semaphore_mem>>) src(%4 : memref<16x128xf32, #tpu.memory_space<any>>) dst(%5 : memref<16x128xf32, #tpu.memory_space<any>>)
    return
  }
}

</mosaic_0001>

<llo_original>
// kernel: _forward_impl.1
$region0: #{_forward_impl.1}
  #allocation0 [shape = 'u32[]', space=smem, size = 0x4, offset = 0x4, fixed_abs, tag = 'smem constant byte address 0x4 - core index']
  #allocation1 [shape = 'u32[144,128]{1,0:T(1,128)}', space=vmem, size = 0x12000, scoped, tag = 'internal scratch']
  #allocation2 [shape = 's32[1]{0}', space=sflag, size = 0x4, scoped, tag = 'scratch operand']
  #allocation3 [shape = 's32[]', space=sflag, size = 0x4, offset = 0, fixed_abs, tag = 'sflag constant byte address 0x0 - dummy sync flag']
  %s0 = inlined_call_operand.vmem [shape: f32[16,128], index: 0, kind: input, shape index: {}]
  %s1 = inlined_call_operand.vmem [shape: f32[16,128], index: 1, kind: output, shape index: {}]
  %s2 = sld [smem:[#allocation0]]
  $region36: #{_forward_impl.1} parent=0
    _
  %s4 = ssub.s32 1, %s2
  %s5 = scalar_select 0, %s4, %s2
  %p7 = scmp.lt.u32.totalorder 16, 8
  %p8 = pneg %p7
  // Predicated region
  $region2: #{_forward_impl.1} parent=0 // pred_check
    _
  $region3: #{_forward_impl.1} parent=0 // pred_check_branch
    %10 = sbr.rel (%p7) target = $region5
  $region4: #{_forward_impl.1} parent=0 // pred_region
    %s25 = sand.u32 16, 7
    %p26 = scmp.eq.s32.totalorder %s25, 0
    // Predicated region
    $region17: #{_forward_impl.1} parent=4 // pred_check
      %p27 = pneg %p26
    $region18: #{_forward_impl.1} parent=4 // pred_check_branch
      %29 = sbr.rel (%p27) target = $region20
    $region19: #{_forward_impl.1} parent=4 // pred_region
      loop: start=0, step=1, limit=1
      $region21: #{_forward_impl.1} parent=19 // loop_pre_header
        _
      $region22: #{_forward_impl.1} parent=19 // loop_header
        %s31 = sphi 0, %s35
        %p32 = scmp.ge.s32.totalorder %s31, 1
        %s36 = sphi %s0, %s0
        %s37 = sphi %s1, %s1
      $region23: #{_forward_impl.1} parent=19 // loop_header_branch
        %34 = sbr.rel (%p32) target = $region27
      $region24: #{_forward_impl.1} parent=19 // loop_body
        %v38 = vld [vmem:[%s36] sm:$0xff]
        %39 = vst [vmem:[%s37] sm:$0xff] %v38
        %v40 = vld [vmem:[%s36 + $0x8] sm:$0xff]
        %41 = vst [vmem:[%s37 + $0x8] sm:$0xff] %v40
      $region25: #{_forward_impl.1} parent=19 // loop_footer
        %s35 = sadd.s32 1, %s31
      $region26: #{_forward_impl.1} parent=19 // loop_footer_branch
        %30 = sbr.rel target = $region22
      $region27: #{_forward_impl.1} parent=19 // loop_exit
        _
    $region20: #{_forward_impl.1} parent=4 // pred_fallthru
      _
    %p42 = pneg %p26
    // Predicated region
    $region28: #{_forward_impl.1} parent=4 // pred_check
      _
    $region29: #{_forward_impl.1} parent=4 // pred_check_branch
      %44 = sbr.rel (%p26) target = $region31
    $region30: #{_forward_impl.1} parent=4 // pred_region
      %s45 = sand.u32 16, 7
    $region31: #{_forward_impl.1} parent=4 // pred_fallthru
      _
  $region5: #{_forward_impl.1} parent=0 // pred_fallthru
    _
  // Predicated region
  $region6: #{_forward_impl.1} parent=0 // pred_check
    %p11 = pneg %p7
  $region7: #{_forward_impl.1} parent=0 // pred_check_branch
    %13 = sbr.rel (%p11) target = $region9
  $region8: #{_forward_impl.1} parent=0 // pred_region
    %s14 = sshllo.u32 0, 16
    loop: start=0, step=1, limit=1
    $region10: #{_forward_impl.1} parent=8 // loop_pre_header
      _
    $region11: #{_forward_impl.1} parent=8 // loop_header
      %s16 = sphi 0, %s20
      %p17 = scmp.ge.s32.totalorder %s16, 1
      %s21 = sphi %s0, %s0
      %s22 = sphi %s1, %s1
    $region12: #{_forward_impl.1} parent=8 // loop_header_branch
      %19 = sbr.rel (%p17) target = $region16
    $region13: #{_forward_impl.1} parent=8 // loop_body
      %v23 = vld [vmem:[%s21] sm:%s14]
      %24 = vst [vmem:[%s22] sm:%s14] %v23
    $region14: #{_forward_impl.1} parent=8 // loop_footer
      %s20 = sadd.s32 1, %s16
    $region15: #{_forward_impl.1} parent=8 // loop_footer_branch
      %15 = sbr.rel target = $region11
    $region16: #{_forward_impl.1} parent=8 // loop_exit
      _
  $region9: #{_forward_impl.1} parent=0 // pred_fallthru
    _
  // Predicated region
  $region32: #{_forward_impl.1} parent=0 // pred_check
    _
  $region33: #{_forward_impl.1} parent=0 // pred_check_branch
    %48 = sbr.rel (0) target = $region35
  $region34: #{_forward_impl.1} parent=0 // pred_region
    %49 = vsyncadd [#allocation2], 256
  $region35: #{_forward_impl.1} parent=0 // pred_fallthru
    _
  %s50 = smul.u32 16, 1
  %s51 = sshll.u32 %s50, 4
  %52 = dma.done [#allocation2], %s51
  %53 = vsyncmov [#allocation2]
  %s54 = vpop.sfrf %53
  %p55 = scmp.eq.s32.totalorder %s54, 0
  %p56 = pneg %p55
  %58 = shalt.err (%p56)

</llo_original>
